<compile_context>
chip_gen: v7x
topology: tpu7x:2x2x1
jax: 0.10.0
libtpu: 0.0.40
codegen_flags: <defaults>
</compile_context>

<pallas_src>
import numpy as np
import jax
import jax.numpy as jnp
from jax.experimental import pallas as pl
from jax.experimental.pallas import tpu as pltpu


def _round_up(x, m):
    return (x + m - 1) // m * m


def _cdiv(a, b):
    return -(-a // b)


def _vmem_capacity_bytes():
    try:
        info = pltpu.get_tpu_info()
        cap = int(getattr(info, "vmem_capacity_bytes", 0))
        if cap > 0:
            return cap
    except Exception:
        pass
    return 64 << 20  # conservative: v7x per-TensorCore VMEM; v5e/v6e have 128 MiB


def _make_kernel(m_valid, tm, mask_rows):
    def kernel(pred_ref, gt_ref, c_ref, out_ref):
        # Elementwise diff in f32 (VPU), matmul operands bf16 (MXU), f32 acc.
        d = pred_ref[...].astype(jnp.float32) - gt_ref[...].astype(jnp.float32)
        if mask_rows:
            # Ragged last row tile: zero the invalid tail rows in-kernel
            # (replaces a wrapper-side jnp.pad that doubled HBM traffic).
            row = jax.lax.broadcasted_iota(jnp.int32, d.shape, 0)
            d = jnp.where(row < (m_valid - pl.program_id(0) * tm), d, 0.0)
        r = jnp.dot(d.astype(jnp.bfloat16), c_ref[...],
                    preferred_element_type=jnp.float32)       # (tm, tk) f32
        # Lane-dense (1, tk) per-block partial column sum of squares.
        out_ref[...] = jnp.sum(r * r, axis=0, keepdims=True)
    return kernel


def fourier_mse_loss(pred, gt, *, target_step_bytes=4 << 20):
    assert pred.shape == gt.shape
    orig_shape = pred.shape
    N = int(orig_shape[-1])
    M = 1
    for s in orig_shape[:-1]:
        M *= int(s)

    pred2 = pred.reshape(M, N)
    gt2 = gt.reshape(M, N)

    # Only tiny-M needs a real pad (one sublane); zero rows add 0 to the SSE.
    M_data = M
    if M < 8:
        pred2 = jnp.pad(pred2, ((0, 8 - M), (0, 0)))
        gt2 = jnp.pad(gt2, ((0, 8 - M), (0, 0)))
        M_data = 8

    itemsize = max(int(pred2.dtype.itemsize), int(gt2.dtype.itemsize))

    # --- VMEM budget (generation-aware) -------------------------------------
    vmem_cap = _vmem_capacity_bytes()
    budget = (vmem_cap * 3) // 4

    # --- frequency (K) tiling: bound C residency + f32 intermediate ---------
    K = N // 2 + 1
    K_pad = _round_up(K, 128)
    c_budget = budget // 3
    tk_cap = max(128, (c_budget // (2 * N * 2)) // 128 * 128)
    K_grid = max(1, _cdiv(K_pad, tk_cap))
    tk = _round_up(_cdiv(K_pad, K_grid), 128)
    K_tot = K_grid * tk
    c_bytes = N * tk * 2                       # bf16 cosine tile
    single_buffer_c = (K_grid == 1) and (c_bytes > (4 << 20))
    c_bufs = 1 if single_buffer_c else 2

    # --- row tile: ~target_step_bytes of input per grid step ----------------
    tm = _round_up(max(8, _cdiv(target_step_bytes, 2 * N * itemsize)), 8)
    tm = min(tm, _round_up(M_data, 8))

    def vmem_need(tm_):
        return (2 * 2 * tm_ * N * itemsize     # pred + gt, double-buffered
                + c_bufs * c_bytes             # cosine tile(s)
                + 2 * tk * 4                   # output rows, double-buffered
                + 2 * tm_ * tk * 4             # f32 matmul result + square
                + (2 << 20))                   # margin

    while vmem_need(tm) > budget and tm > 8:
        tm = max(8, _round_up(tm // 2, 8))

    num_blocks = _cdiv(M_data, tm)
    # Keep >=2 row blocks so the "parallel" axis can feed both TensorCores on
    # v7x (no-op on single-core chips), but only when steps stay >= ~1 MiB.
    if num_blocks == 1 and M_data > 8:
        half = _round_up(_cdiv(M_data, 2), 8)
        if 2 * half * N * itemsize >= (1 << 20):
            tm = half
            num_blocks = _cdiv(M_data, tm)

    mask_rows = (M_data % tm) != 0             # ragged tail handled in-kernel

    # --- half-spectrum real-DFT matrix, exact integer angle, bf16 for MXU ---
    n_idx = np.arange(N, dtype=np.int64)
    k_idx = np.arange(K, dtype=np.int64)
    ang = (np.outer(n_idx, k_idx) % N).astype(np.float64) * (2.0 * np.pi / N)
    C_np = np.zeros((N, K_tot), dtype=np.float32)
    C_np[:, :K] = np.cos(ang).astype(np.float32)
    C = jnp.asarray(C_np, dtype=jnp.bfloat16)

    # Spectral fold weights: |R_k| == |R_{N-k}|.
    w_np = np.full((K,), 2.0, dtype=np.float32)
    w_np[0] = 1.0
    if N % 2 == 0:
        w_np[-1] = 1.0
    w = jnp.asarray(w_np)

    c_spec_kwargs = {}
    if single_buffer_c:
        # Constant index_map -> the second pipeline buffer is dead weight.
        c_spec_kwargs["pipeline_mode"] = pl.Buffered(1)
    c_spec = pl.BlockSpec((N, tk), lambda i, j: (0, j), **c_spec_kwargs)

    vmem_limit = int(min(max(vmem_need(tm) + (4 << 20), 24 << 20),
                         vmem_cap - (8 << 20)))

    partial = pl.pallas_call(
        _make_kernel(M_data, tm, mask_rows),
        out_shape=jax.ShapeDtypeStruct((num_blocks, K_tot), jnp.float32),
        grid_spec=pltpu.PrefetchScalarGridSpec(
            num_scalar_prefetch=0,
            grid=(num_blocks, K_grid),
            in_specs=[
                pl.BlockSpec((tm, N), lambda i, j: (i, 0)),   # pred rows
                pl.BlockSpec((tm, N), lambda i, j: (i, 0)),   # gt rows
                c_spec,                                       # cosine columns
            ],
            out_specs=pl.BlockSpec((1, tk), lambda i, j: (i, j)),
        ),
        compiler_params=pltpu.CompilerParams(
            dimension_semantics=("parallel", "arbitrary"),
            vmem_limit_bytes=vmem_limit),
    )(pred2, gt2, C)

    col_sse = jnp.sum(partial, axis=0)[:K]     # per-frequency SSE (folded)
    sse = jnp.dot(col_sse, w)                  # unfold the cos symmetry
    return sse / jnp.float32(M * N)


def fourier_mse_loss_ref(pred, gt):
    pred_real = jnp.real(jnp.fft.fft(pred, axis=-1))
    gt_real = jnp.real(jnp.fft.fft(gt, axis=-1))
    return jnp.mean((pred_real - gt_real) ** 2)


if __name__ == "__main__":
    key = jax.random.PRNGKey(0)
    k1, k2 = jax.random.split(key)
    # Small shapes consistent with the module's forward (FFT along last dim).
    pred = jax.random.normal(k1, (2, 4, 16, 128), dtype=jnp.float32)
    gt = jax.random.normal(k2, (2, 4, 16, 128), dtype=jnp.float32)

    loss = jax.block_until_ready(fourier_mse_loss(pred, gt))
    ref = jax.block_until_ready(fourier_mse_loss_ref(pred, gt))

    np.testing.assert_allclose(np.asarray(loss), np.asarray(ref),
                               rtol=5e-3, atol=5e-3)
    print("KERNEL_OK")
</pallas_src>

<mosaic_0001>
module attributes {stable_mosaic.version = 11 : i64} {
  func.func @kernel(%arg0: i32, %arg1: i32, %arg2: memref<128x128xf32, #tpu.memory_space<vmem>>, %arg3: memref<128x128xf32, #tpu.memory_space<vmem>>, %arg4: memref<128x128xbf16, #tpu.memory_space<vmem>>, %arg5: memref<1x128xf32, #tpu.memory_space<vmem>>) attributes {dimension_semantics = [#tpu.dimension_semantics<parallel>, #tpu.dimension_semantics<arbitrary>], iteration_bounds = array<i64: 1, 1>, scalar_prefetch = 0 : i64, scratch_operands = 0 : i64, tpu.core_type = #tpu.core_type<tc>, window_params = [{transform_indices = @transform_0, window_bounds = array<i64: 128, 128>}, {transform_indices = @transform_1, window_bounds = array<i64: 128, 128>}, {transform_indices = @transform_2, window_bounds = array<i64: 128, 128>}, {transform_indices = @transform_3, window_bounds = array<i64: 1, 128>}]} {
    %c0 = arith.constant 0 : index
    %c0_0 = arith.constant 0 : index
    %0 = vector.load %arg2[%c0, %c0_0] : memref<128x128xf32, #tpu.memory_space<vmem>>, vector<128x128xf32>
    %c0_1 = arith.constant 0 : index
    %c0_2 = arith.constant 0 : index
    %1 = vector.load %arg3[%c0_1, %c0_2] : memref<128x128xf32, #tpu.memory_space<vmem>>, vector<128x128xf32>
    %2 = arith.subf %0, %1 : vector<128x128xf32>
    %3 = arith.truncf %2 : vector<128x128xf32> to vector<128x128xbf16>
    %c0_3 = arith.constant 0 : index
    %c0_4 = arith.constant 0 : index
    %4 = vector.load %arg4[%c0_3, %c0_4] : memref<128x128xbf16, #tpu.memory_space<vmem>>, vector<128x128xbf16>
    %cst = arith.constant dense<0.000000e+00> : vector<128x128xf32>
    %5 = tpu.matmul %3, %4, %cst {dimension_numbers = #tpu.dot_dimension_numbers<[1], [0], [0], [1], [0, 0, 1, 1], [], []>} : vector<128x128xbf16>, vector<128x128xbf16>, vector<128x128xf32> -> vector<128x128xf32>
    %6 = arith.mulf %5, %5 : vector<128x128xf32>
    %cst_5 = arith.constant dense<0.000000e+00> : vector<128xf32>
    %7 = vector.multi_reduction <add>, %6, %cst_5 [0] : vector<128x128xf32> to vector<128xf32>
    %8 = vector.shape_cast %7 : vector<128xf32> to vector<1x128xf32>
    %c0_6 = arith.constant 0 : index
    %c0_7 = arith.constant 0 : index
    %9 = vector.load %arg5[%c0_6, %c0_7] : memref<1x128xf32, #tpu.memory_space<vmem>>, vector<1x128xf32>
    tpu.vector_store %arg5[%c0_6, %c0_7], %8 {strides = array<i32>} : memref<1x128xf32, #tpu.memory_space<vmem>>, vector<1x128xf32>,
    return
  }
  func.func @transform_0(%arg0: i32, %arg1: i32) -> (i32, i32) {
    %c0_i32 = arith.constant 0 : i32
    %c0_i32_0 = arith.constant 0 : i32
    return %arg0, %c0_i32 : i32, i32
  }
  func.func @transform_1(%arg0: i32, %arg1: i32) -> (i32, i32) {
    %c0_i32 = arith.constant 0 : i32
    %c0_i32_0 = arith.constant 0 : i32
    return %arg0, %c0_i32 : i32, i32
  }
  func.func @transform_2(%arg0: i32, %arg1: i32) -> (i32, i32) {
    %c0_i32 = arith.constant 0 : i32
    %c0_i32_0 = arith.constant 0 : i32
    return %c0_i32, %arg1 : i32, i32
  }
  func.func @transform_3(%arg0: i32, %arg1: i32) -> (i32, i32) {
    %c0_i32 = arith.constant 0 : i32
    return %arg0, %arg1 : i32, i32
  }
}

</mosaic_0001>

<llo_original>
// kernel: tpu_custom_call.1
$region0: #{tpu_custom_call.1}
  #allocation0 [shape = 'u32[]', space=smem, size = 0x4, offset = 0x4, fixed_abs, tag = 'smem constant byte address 0x4 - core index']
  #allocation1 [shape = 'u32[144,128]{1,0:T(1,128)}', space=vmem, size = 0x12000, scoped, tag = 'internal scratch']
  %s0 = inlined_call_operand.hbm [shape: f32[128,128], index: 0, kind: input, shape index: {}]
  %s1 = inlined_call_operand.hbm [shape: f32[128,128], index: 1, kind: input, shape index: {}]
  %s2 = inlined_call_operand.hbm [shape: bf16[128,128], index: 2, kind: input, shape index: {}]
  %s3 = inlined_call_operand.hbm [shape: f32[1,128], index: 3, kind: output, shape index: {}]
  %s4 = sld [smem:[#allocation0]]
  $region34: #{tpu_custom_call.1} parent=0
    _
  %s6 = ssub.s32 1, %s4
  %s7 = scalar_select 0, %s6, %s4
  $region1: #{tpu_custom_call.1} parent=0
    #allocation2 [shape = 'u8[65536]{0}', space=vmem, size = 0x10000, scoped, tag = 'input window, operand 0, single buffered']
    #allocation3 [shape = 's32[1]{0}', space=sflag, size = 0x4, scoped, tag = 'scoped memory for tpu_custom_call.1']
    #allocation4 [shape = 's32[1]{0}', space=sflag, size = 0x4, scoped, tag = 'scoped memory for tpu_custom_call.1']
    #allocation5 [shape = 'u8[65536]{0}', space=vmem, size = 0x10000, scoped, tag = 'input window, operand 1, single buffered']
    #allocation6 [shape = 's32[1]{0}', space=sflag, size = 0x4, scoped, tag = 'scoped memory for tpu_custom_call.1']
    #allocation7 [shape = 'u8[32768]{0}', space=vmem, size = 0x8000, scoped, tag = 'input window, operand 2, single buffered']
    #allocation8 [shape = 'u8[512]{0}', space=vmem, size = 0x400, scoped, tag = 'output window, operand 0, single buffered']
    %8 = vsyncpa [#allocation3], 0
    %9 = vsyncpa [#allocation6], 0
    %10 = vsyncpa [#allocation4], 0
    // Predicated region
    $region2: #{tpu_custom_call.1} parent=1 // pred_check
      _
    $region3: #{tpu_custom_call.1} parent=1 // pred_check_branch
      %12 = sbr.rel (0) target = $region5
    $region4: #{tpu_custom_call.1} parent=1 // pred_region
      %s14 = ssub.s32 2048, 2048
      %15 = vsyncadd [#allocation3], %s14
      %s16 = sshll.u32 [#allocation2], 4
      %s17 = int_to_ptr.vmem [resolvable:$true] %s16
      %22 = dma.hbm_to_vmem [thread:$0]  %s0, 2048, %s17, [#allocation3], 128, 128, 8
    $region5: #{tpu_custom_call.1} parent=1 // pred_fallthru
      _
    // Predicated region
    $region6: #{tpu_custom_call.1} parent=1 // pred_check
      _
    $region7: #{tpu_custom_call.1} parent=1 // pred_check_branch
      %24 = sbr.rel (0) target = $region9
    $region8: #{tpu_custom_call.1} parent=1 // pred_region
      %s26 = ssub.s32 2048, 2048
      %27 = vsyncadd [#allocation6], %s26
      %s28 = sshll.u32 [#allocation5], 4
      %s29 = int_to_ptr.vmem [resolvable:$true] %s28
      %34 = dma.hbm_to_vmem [thread:$0]  %s1, 2048, %s29, [#allocation6], 128, 128, 8
    $region9: #{tpu_custom_call.1} parent=1 // pred_fallthru
      _
    // Predicated region
    $region10: #{tpu_custom_call.1} parent=1 // pred_check
      _
    $region11: #{tpu_custom_call.1} parent=1 // pred_check_branch
      %36 = sbr.rel (0) target = $region13
    $region12: #{tpu_custom_call.1} parent=1 // pred_region
      %s38 = ssub.s32 1024, 1024
      %39 = vsyncadd [#allocation6], %s38
      %s40 = sshll.u32 [#allocation7], 4
      %s41 = int_to_ptr.vmem [resolvable:$true] %s40
      %46 = dma.hbm_to_vmem [thread:$0]  %s2, 1024, %s41, [#allocation6], 64, 64, 4
    $region13: #{tpu_custom_call.1} parent=1 // pred_fallthru
      _
    // Predicated region
    $region14: #{tpu_custom_call.1} parent=1 // pred_check
      _
    $region15: #{tpu_custom_call.1} parent=1 // pred_check_branch
      %48 = sbr.rel (0) target = $region17
    $region16: #{tpu_custom_call.1} parent=1 // pred_region
      %49 = dma.done [#allocation3], 2048
    $region17: #{tpu_custom_call.1} parent=1 // pred_fallthru
      _
    // Predicated region
    $region18: #{tpu_custom_call.1} parent=1 // pred_check
      _
    $region19: #{tpu_custom_call.1} parent=1 // pred_check_branch
      %51 = sbr.rel (0) target = $region21
    $region20: #{tpu_custom_call.1} parent=1 // pred_region
      %52 = dma.done [#allocation6], 2048
    $region21: #{tpu_custom_call.1} parent=1 // pred_fallthru
      _
    // Predicated region
    $region22: #{tpu_custom_call.1} parent=1 // pred_check
      _
    $region23: #{tpu_custom_call.1} parent=1 // pred_check_branch
      %54 = sbr.rel (0) target = $region25
    $region24: #{tpu_custom_call.1} parent=1 // pred_region
      %55 = dma.done [#allocation6], 1024
    $region25: #{tpu_custom_call.1} parent=1 // pred_fallthru
      _
    %v57 = vld [vmem:[#allocation2] sm:$0xff]
    %v58 = vld [vmem:[#allocation2 + $0x8] sm:$0xff]
    %v59 = vld [vmem:[#allocation2 + $0x10] sm:$0xff]
    %v60 = vld [vmem:[#allocation2 + $0x18] sm:$0xff]
    %v61 = vld [vmem:[#allocation2 + $0x20] sm:$0xff]
    %v62 = vld [vmem:[#allocation2 + $0x28] sm:$0xff]
    %v63 = vld [vmem:[#allocation2 + $0x30] sm:$0xff]
    %v64 = vld [vmem:[#allocation2 + $0x38] sm:$0xff]
    %v65 = vld [vmem:[#allocation2 + $0x40] sm:$0xff]
    %v66 = vld [vmem:[#allocation2 + $0x48] sm:$0xff]
    %v67 = vld [vmem:[#allocation2 + $0x50] sm:$0xff]
    %v68 = vld [vmem:[#allocation2 + $0x58] sm:$0xff]
    %v69 = vld [vmem:[#allocation2 + $0x60] sm:$0xff]
    %v70 = vld [vmem:[#allocation2 + $0x68] sm:$0xff]
    %v71 = vld [vmem:[#allocation2 + $0x70] sm:$0xff]
    %v72 = vld [vmem:[#allocation2 + $0x78] sm:$0xff]
    %v73 = vld [vmem:[#allocation5] sm:$0xff]
    %v74 = vld [vmem:[#allocation5 + $0x8] sm:$0xff]
    %v75 = vld [vmem:[#allocation5 + $0x10] sm:$0xff]
    %v76 = vld [vmem:[#allocation5 + $0x18] sm:$0xff]
    %v77 = vld [vmem:[#allocation5 + $0x20] sm:$0xff]
    %v78 = vld [vmem:[#allocation5 + $0x28] sm:$0xff]
    %v79 = vld [vmem:[#allocation5 + $0x30] sm:$0xff]
    %v80 = vld [vmem:[#allocation5 + $0x38] sm:$0xff]
    %v81 = vld [vmem:[#allocation5 + $0x40] sm:$0xff]
    %v82 = vld [vmem:[#allocation5 + $0x48] sm:$0xff]
    %v83 = vld [vmem:[#allocation5 + $0x50] sm:$0xff]
    %v84 = vld [vmem:[#allocation5 + $0x58] sm:$0xff]
    %v85 = vld [vmem:[#allocation5 + $0x60] sm:$0xff]
    %v86 = vld [vmem:[#allocation5 + $0x68] sm:$0xff]
    %v87 = vld [vmem:[#allocation5 + $0x70] sm:$0xff]
    %v88 = vld [vmem:[#allocation5 + $0x78] sm:$0xff]
    %v89 = vsub.f32 %v57, %v73
    %v90 = vsub.f32 %v58, %v74
    %v91 = vsub.f32 %v59, %v75
    %v92 = vsub.f32 %v60, %v76
    %v93 = vsub.f32 %v61, %v77
    %v94 = vsub.f32 %v62, %v78
    %v95 = vsub.f32 %v63, %v79
    %v96 = vsub.f32 %v64, %v80
    %v97 = vsub.f32 %v65, %v81
    %v98 = vsub.f32 %v66, %v82
    %v99 = vsub.f32 %v67, %v83
    %v100 = vsub.f32 %v68, %v84
    %v101 = vsub.f32 %v69, %v85
    %v102 = vsub.f32 %v70, %v86
    %v103 = vsub.f32 %v71, %v87
    %v104 = vsub.f32 %v72, %v88
    %v105 = vpack.c.bf16 %v90, %v89
    %v106 = vpack.c.bf16 %v92, %v91
    %v107 = vpack.c.bf16 %v94, %v93
    %v108 = vpack.c.bf16 %v96, %v95
    %v109 = vpack.c.bf16 %v98, %v97
    %v110 = vpack.c.bf16 %v100, %v99
    %v111 = vpack.c.bf16 %v102, %v101
    %v112 = vpack.c.bf16 %v104, %v103
    %v113 = vld [vmem:[#allocation7] sm:$0xf]
    %v114 = vld [vmem:[#allocation7 + $0x4] sm:$0xf]
    %v115 = vld [vmem:[#allocation7 + $0x8] sm:$0xf]
    %v116 = vld [vmem:[#allocation7 + $0xc] sm:$0xf]
    %v117 = vld [vmem:[#allocation7 + $0x10] sm:$0xf]
    %v118 = vld [vmem:[#allocation7 + $0x14] sm:$0xf]
    %v119 = vld [vmem:[#allocation7 + $0x18] sm:$0xf]
    %v120 = vld [vmem:[#allocation7 + $0x1c] sm:$0xf]
    %v121 = vld [vmem:[#allocation7 + $0x20] sm:$0xf]
    %v122 = vld [vmem:[#allocation7 + $0x24] sm:$0xf]
    %v123 = vld [vmem:[#allocation7 + $0x28] sm:$0xf]
    %v124 = vld [vmem:[#allocation7 + $0x2c] sm:$0xf]
    %v125 = vld [vmem:[#allocation7 + $0x30] sm:$0xf]
    %v126 = vld [vmem:[#allocation7 + $0x34] sm:$0xf]
    %v127 = vld [vmem:[#allocation7 + $0x38] sm:$0xf]
    %v128 = vld [vmem:[#allocation7 + $0x3c] sm:$0xf]
    %v145 = vunpack.c.l.b16 %v113
    %v146 = vunpack.c.l.b16 %v114
    %v147 = vunpack.c.l.b16 %v115
    %v148 = vunpack.c.l.b16 %v116
    %v149 = vunpack.c.l.b16 %v117
    %v150 = vunpack.c.l.b16 %v118
    %v151 = vunpack.c.l.b16 %v119
    %v152 = vunpack.c.l.b16 %v120
    %v153 = vunpack.c.l.b16 %v121
    %v154 = vunpack.c.l.b16 %v122
    %v155 = vunpack.c.l.b16 %v123
    %v156 = vunpack.c.l.b16 %v124
    %v157 = vunpack.c.l.b16 %v125
    %v158 = vunpack.c.l.b16 %v126
    %v159 = vunpack.c.l.b16 %v127
    %v160 = vunpack.c.l.b16 %v128
    %v161 = vpack.c.b16 %v146, %v145
    %v162 = vpack.c.b16 %v148, %v147
    %v163 = vpack.c.b16 %v150, %v149
    %v164 = vpack.c.b16 %v152, %v151
    %v165 = vpack.c.b16 %v154, %v153
    %v166 = vpack.c.b16 %v156, %v155
    %v167 = vpack.c.b16 %v158, %v157
    %v168 = vpack.c.b16 %v160, %v159
    %177 = vmatprep.subr.bf16.mxu0 0
    %178 = vmatpush1.bf16.msra.mxu0 %v161
    %179 = vmatprep.subr.bf16.mxu0 0
    %180 = vmatpush1.bf16.msra.mxu0 %v162
    %181 = vmatprep.subr.bf16.mxu0 0
    %182 = vmatpush1.bf16.msra.mxu0 %v163
    %183 = vmatprep.subr.bf16.mxu0 0
    %184 = vmatpush1.bf16.msra.mxu0 %v164
    %185 = vmatprep.subr.bf16.mxu0 0
    %186 = vmatpush1.bf16.msra.mxu0 %v165
    %187 = vmatprep.subr.bf16.mxu0 0
    %188 = vmatpush1.bf16.msra.mxu0 %v166
    %189 = vmatprep.subr.bf16.mxu0 0
    %190 = vmatpush1.bf16.msra.mxu0 %v167
    %191 = vmatprep.subr.bf16.mxu0 0
    %192 = vmatpush1.bf16.msra.mxu0 %v168
    %193 = vmatprep.subr.bf16.mxu0 0
    %194 = vmatpush1.bf16.msra.mxu0 0
    %195 = vmatprep.subr.bf16.mxu0 0
    %196 = vmatpush1.bf16.msra.mxu0 0
    %197 = vmatprep.subr.bf16.mxu0 0
    %198 = vmatpush1.bf16.msra.mxu0 0
    %199 = vmatprep.subr.bf16.mxu0 0
    %200 = vmatpush1.bf16.msra.mxu0 0
    %201 = vmatprep.subr.bf16.mxu0 0
    %202 = vmatpush1.bf16.msra.mxu0 0
    %203 = vmatprep.subr.bf16.mxu0 0
    %204 = vmatpush1.bf16.msra.mxu0 0
    %205 = vmatprep.subr.bf16.mxu0 0
    %206 = vmatpush1.bf16.msra.mxu0 0
    %207 = vmatprep.subr.bf16.mxu0 0
    %208 = vmatpush1.bf16.msra.mxu0 0
    %209 = vmatprep.mubr.bf16.mxu0 0
    %210 = vmatmul.mubr.bf16.gmra.mrb[0].mxu0 %v105
    %v211 = vpop.f32.mrb[0].mxu0
    %v212 = vadd.f32 0.0, %v211
    %v213 = vpop.f32.mrb[0].mxu0
    %v214 = vpop.f32.mrb[0].mxu0
    %v215 = vadd.f32 0.0, %v214
    %v216 = vpop.f32.mrb[0].mxu0
    %217 = vmatprep.mubr.bf16.mxu0 0
    %218 = vmatmul.mubr.bf16.gmra.mrb[0].mxu0 %v106
    %v219 = vpop.f32.mrb[0].mxu0
    %v220 = vadd.f32 0.0, %v219
    %v221 = vpop.f32.mrb[0].mxu0
    %v222 = vpop.f32.mrb[0].mxu0
    %v223 = vadd.f32 0.0, %v222
    %v224 = vpop.f32.mrb[0].mxu0
    %225 = vmatprep.mubr.bf16.mxu0 0
    %226 = vmatmul.mubr.bf16.gmra.mrb[0].mxu0 %v107
    %v227 = vpop.f32.mrb[0].mxu0
    %v228 = vadd.f32 0.0, %v227
    %v229 = vpop.f32.mrb[0].mxu0
    %v230 = vpop.f32.mrb[0].mxu0
    %v231 = vadd.f32 0.0, %v230
    %v232 = vpop.f32.mrb[0].mxu0
    %233 = vmatprep.mubr.bf16.mxu0 0
    %234 = vmatmul.mubr.bf16.gmra.mrb[0].mxu0 %v108
    %v235 = vpop.f32.mrb[0].mxu0
    %v236 = vadd.f32 0.0, %v235
    %v237 = vpop.f32.mrb[0].mxu0
    %v238 = vpop.f32.mrb[0].mxu0
    %v239 = vadd.f32 0.0, %v238
    %v240 = vpop.f32.mrb[0].mxu0
    %241 = vmatprep.mubr.bf16.mxu0 0
    %242 = vmatmul.mubr.bf16.gmra.mrb[0].mxu0 %v109
    %v243 = vpop.f32.mrb[0].mxu0
    %v244 = vadd.f32 0.0, %v243
    %v245 = vpop.f32.mrb[0].mxu0
    %v246 = vpop.f32.mrb[0].mxu0
    %v247 = vadd.f32 0.0, %v246
    %v248 = vpop.f32.mrb[0].mxu0
    %249 = vmatprep.mubr.bf16.mxu0 0
    %250 = vmatmul.mubr.bf16.gmra.mrb[0].mxu0 %v110
    %v251 = vpop.f32.mrb[0].mxu0
    %v252 = vadd.f32 0.0, %v251
    %v253 = vpop.f32.mrb[0].mxu0
    %v254 = vpop.f32.mrb[0].mxu0
    %v255 = vadd.f32 0.0, %v254
    %v256 = vpop.f32.mrb[0].mxu0
    %257 = vmatprep.mubr.bf16.mxu0 0
    %258 = vmatmul.mubr.bf16.gmra.mrb[0].mxu0 %v111
    %v259 = vpop.f32.mrb[0].mxu0
    %v260 = vadd.f32 0.0, %v259
    %v261 = vpop.f32.mrb[0].mxu0
    %v262 = vpop.f32.mrb[0].mxu0
    %v263 = vadd.f32 0.0, %v262
    %v264 = vpop.f32.mrb[0].mxu0
    %265 = vmatprep.mubr.bf16.mxu0 0
    %266 = vmatmul.mubr.bf16.gmra.mrb[0].mxu0 %v112
    %v267 = vpop.f32.mrb[0].mxu0
    %v268 = vadd.f32 0.0, %v267
    %v269 = vpop.f32.mrb[0].mxu0
    %v270 = vpop.f32.mrb[0].mxu0
    %v271 = vadd.f32 0.0, %v270
    %v272 = vpop.f32.mrb[0].mxu0
    %273 = vdwg.mxu0
    %v274 = vmul.f32 %v212, %v212
    %v275 = vmul.f32 %v215, %v215
    %v276 = vmul.f32 %v220, %v220
    %v277 = vmul.f32 %v223, %v223
    %v278 = vmul.f32 %v228, %v228
    %v279 = vmul.f32 %v231, %v231
    %v280 = vmul.f32 %v236, %v236
    %v281 = vmul.f32 %v239, %v239
    %v282 = vmul.f32 %v244, %v244
    %v283 = vmul.f32 %v247, %v247
    %v284 = vmul.f32 %v252, %v252
    %v285 = vmul.f32 %v255, %v255
    %v286 = vmul.f32 %v260, %v260
    %v287 = vmul.f32 %v263, %v263
    %v288 = vmul.f32 %v268, %v268
    %v289 = vmul.f32 %v271, %v271
    %v290 = vadd.f32 %v274, %v275
    %v291 = vadd.f32 %v290, %v276
    %v292 = vadd.f32 %v291, %v277
    %v293 = vadd.f32 %v292, %v278
    %v294 = vadd.f32 %v293, %v279
    %v295 = vadd.f32 %v294, %v280
    %v296 = vadd.f32 %v295, %v281
    %v297 = vadd.f32 %v296, %v282
    %v298 = vadd.f32 %v297, %v283
    %v299 = vadd.f32 %v298, %v284
    %v300 = vadd.f32 %v299, %v285
    %v301 = vadd.f32 %v300, %v286
    %v302 = vadd.f32 %v301, %v287
    %v303 = vadd.f32 %v302, %v288
    %v304 = vadd.f32 %v303, %v289
    %v305 = vrot.slane %v304, 4
    %v306 = vadd.f32 %v304, %v305
    %v307 = vrot.slane %v306, 2
    %v308 = vadd.f32 %v306, %v307
    %v309 = vrot.slane %v308, 1
    %v310 = vadd.f32 %v308, %v309
    %311 = vst [vmem:[#allocation8] sm:$0x1] %v310
    // Predicated region
    $region26: #{tpu_custom_call.1} parent=1 // pred_check
      _
    $region27: #{tpu_custom_call.1} parent=1 // pred_check_branch
      %313 = sbr.rel (0) target = $region29
    $region28: #{tpu_custom_call.1} parent=1 // pred_region
      %s315 = ssub.s32 16, 16
      %316 = vsyncadd [#allocation4], %s315
      %s318 = sshll.u32 [#allocation8], 4
      %s319 = int_to_ptr.vmem [resolvable:$true] %s318
      %321 = dma.vmem_to_hbm [thread:$0]  %s319, 16, %s3, [#allocation4]
    $region29: #{tpu_custom_call.1} parent=1 // pred_fallthru
      _
    // Predicated region
    $region30: #{tpu_custom_call.1} parent=1 // pred_check
      _
    $region31: #{tpu_custom_call.1} parent=1 // pred_check_branch
      %323 = sbr.rel (0) target = $region33
    $region32: #{tpu_custom_call.1} parent=1 // pred_region
      %324 = dma.done [#allocation4], 16
    $region33: #{tpu_custom_call.1} parent=1 // pred_fallthru
      _
    %325 = vsyncpa [#allocation3], 1
    %326 = vsyncpa [#allocation6], 1
    %327 = vsyncpa [#allocation4], 1

</llo_original>
